<compile_context>
chip_gen: v5e
topology: v5e:2x2
jax: 0.10.0
libtpu: 0.0.40
codegen_flags: <defaults>
</compile_context>

<pallas_src>
import math

import jax
import jax.numpy as jnp
from jax.experimental import pallas as pl
from jax.experimental.pallas import tpu as pltpu

LANE = 128                       # TPU lane width
IN_DIM, HID_DIM, OUT_DIM = 3, 10, 3


def bnn_kernel(x_ref, w1_ref, w23_ref, b_ref, o_ref):
    """Fused 3-layer forward on one batch tile.

    x_ref  : (tile_b, 3)     f32  -- narrow HBM-facing input block
    w1_ref : (3, 128)        f32  -- layer-1 weight (real K=3, VPU path)
    w23_ref: (2, 128, 128)   bf16 -- layers 2 & 3, zero-padded, resident
    b_ref  : (3, 128)        f32  -- biases, zero-padded, resident
    o_ref  : (tile_b, 3)     f32
    """
    x = x_ref[...]                                    # (tile_b, 3)
    w1 = w1_ref[...]                                  # (3, 128)

    # Layer 1: K=3 -> cheaper/safer as 3 broadcasted FMAs than a zero-padded
    # K=128 MXU push (avoids multiplying zeros on the MXU, esp. on v5e).
    h = b_ref[0:1, :]                                 # (1, 128)
    for j in range(IN_DIM):
        h = h + x[:, j:j + 1] * w1[j:j + 1, :]        # -> (tile_b, 128)
    z = jnp.tanh(h)                                   # lanes >= 10 stay exactly 0

    # Layers 2 & 3: lane-dense bf16 MXU matmuls, f32 accumulation.
    z = jnp.tanh(jnp.dot(z.astype(jnp.bfloat16), w23_ref[0],
                         preferred_element_type=jnp.float32) + b_ref[1:2, :])
    y = jnp.abs(jnp.dot(z.astype(jnp.bfloat16), w23_ref[1],
                        preferred_element_type=jnp.float32) + b_ref[2:3, :])

    o_ref[...] = y[:, :OUT_DIM]                       # narrow (3-lane) store


def _round_up(n, m):
    return -(-n // m) * m


def _pad2d(a, rows, cols):
    r, c = a.shape
    return jnp.pad(a, ((0, rows - r), (0, cols - c)))


def init_sampled_params(key, prior_sigma=0.1):
    """One reparameterized sample (w = mu + exp(log_sigma)*eps) per BayesLinear."""
    dims = [(IN_DIM, HID_DIM), (HID_DIM, HID_DIM), (HID_DIM, OUT_DIM)]
    sampled = []
    for li, (fin, fout) in enumerate(dims):
        k = jax.random.fold_in(key, li)
        kwm, kwe, kbm, kbe = jax.random.split(k, 4)
        bound = 1.0 / math.sqrt(fin)
        sigma = math.exp(math.log(prior_sigma))       # log_sigma init = log(prior_sigma)
        w = (jax.random.uniform(kwm, (fin, fout), jnp.float32, -bound, bound)
             + sigma * jax.random.normal(kwe, (fin, fout), dtype=jnp.float32))
        b = (jax.random.uniform(kbm, (1, fout), jnp.float32, -bound, bound)
             + sigma * jax.random.normal(kbe, (1, fout), dtype=jnp.float32))
        sampled.append((w, b))
    return sampled


def prepare_kernel_params(sampled):
    """Pad / pack / cast the sampled weights ONCE (hoisted out of the hot path)."""
    (w1, b1), (w2, b2), (w3, b3) = sampled
    w1p = _pad2d(w1, IN_DIM, LANE)                                   # (3, 128)   f32
    w23 = jnp.stack([_pad2d(w2, LANE, LANE),
                     _pad2d(w3, LANE, LANE)]).astype(jnp.bfloat16)   # (2,128,128) bf16
    bias = jnp.concatenate([_pad2d(b1, 1, LANE),
                            _pad2d(b2, 1, LANE),
                            _pad2d(b3, 1, LANE)], axis=0)            # (3, 128)   f32
    return w1p, w23, bias


def bayesian_net_forward(x, w1p, w23, bias, *, max_tile_b=2048):
    B = x.shape[0]

    # Batch tiling:
    #   B < 64            -> single tile (grid=1, no per-step overhead)
    #   64 <= B <= 2*max  -> two tiles so both v7x TensorCores get work
    #                        (one extra ~0.35us grid step: negligible on v5e/v6e)
    #   larger B          -> max_tile_b-row tiles (VMEM trivially small since the
    #                        HBM-facing x/out blocks are only 3 lanes wide)
    if B < 64:
        tile_b = max(8, _round_up(B, 8))
    elif B <= 2 * max_tile_b:
        tile_b = _round_up(-(-B // 2), 8)
    else:
        tile_b = max_tile_b
    B_pad = _round_up(B, tile_b)

    x_pad = x if B_pad == B else jnp.pad(x, ((0, B_pad - B), (0, 0)))

    out = pl.pallas_call(
        bnn_kernel,
        out_shape=jax.ShapeDtypeStruct((B_pad, OUT_DIM), jnp.float32),
        grid_spec=pltpu.PrefetchScalarGridSpec(
            num_scalar_prefetch=0,
            grid=(B_pad // tile_b,),
            in_specs=[
                pl.BlockSpec((tile_b, IN_DIM), lambda i: (i, 0)),    # x: 3-lane blocks
                pl.BlockSpec((IN_DIM, LANE), lambda i: (0, 0)),      # w1: resident
                pl.BlockSpec((2, LANE, LANE), lambda i: (0, 0, 0)),  # w2,w3: resident
                pl.BlockSpec((3, LANE), lambda i: (0, 0)),           # biases: resident
            ],
            out_specs=pl.BlockSpec((tile_b, OUT_DIM), lambda i: (i, 0)),
        ),
        compiler_params=pltpu.CompilerParams(
            dimension_semantics=("parallel",)),  # v7x: batch tiles split across 2 TCs
    )(x_pad, w1p, w23, bias)

    return out[:B]


def bayesian_net_ref(x, sampled):
    """Pure-JAX f32 reference of the same forward (for correctness check)."""
    z = jnp.tanh(x @ sampled[0][0] + sampled[0][1])
    z = jnp.tanh(z @ sampled[1][0] + sampled[1][1])
    return jnp.abs(z @ sampled[2][0] + sampled[2][1])


if __name__ == "__main__":
    key = jax.random.PRNGKey(0)
    kx, kp = jax.random.split(key)

    B = 16  # batch; feature dims fixed by the module: 3 -> 10 -> 10 -> 3
    x = jax.random.normal(kx, (B, IN_DIM), dtype=jnp.float32)

    sampled = init_sampled_params(kp)
    w1p, w23, bias = prepare_kernel_params(sampled)   # hoisted: done once, not per call

    out = jax.block_until_ready(bayesian_net_forward(x, w1p, w23, bias))

    ref = bayesian_net_ref(x, sampled)
    assert out.shape == (B, OUT_DIM)
    # Kernel uses bf16 matmul operands (default TPU matmul precision does the same
    # truncation in the f32 reference); tolerance covers either rounding path.
    assert jnp.allclose(out, ref, atol=2e-2, rtol=2e-2), float(jnp.max(jnp.abs(out - ref)))

    print("KERNEL_OK")
</pallas_src>

<mosaic_0001>
module attributes {stable_mosaic.version = 11 : i64} {
  func.func @bnn_kernel(%arg0: i32, %arg1: memref<16x3xf32, #tpu.memory_space<vmem>>, %arg2: memref<3x128xf32, #tpu.memory_space<vmem>>, %arg3: memref<2x128x128xbf16, #tpu.memory_space<vmem>>, %arg4: memref<3x128xf32, #tpu.memory_space<vmem>>, %arg5: memref<16x3xf32, #tpu.memory_space<vmem>>) attributes {dimension_semantics = [#tpu.dimension_semantics<parallel>], iteration_bounds = array<i64: 1>, scalar_prefetch = 0 : i64, scratch_operands = 0 : i64, tpu.core_type = #tpu.core_type<tc>, window_params = [{transform_indices = @transform_0, window_bounds = array<i64: 16, 3>}, {pipeline_mode = #tpu.pipeline_mode<synchronous>, transform_indices = @transform_1, window_bounds = array<i64: 3, 128>}, {pipeline_mode = #tpu.pipeline_mode<synchronous>, transform_indices = @transform_2, window_bounds = array<i64: 2, 128, 128>}, {pipeline_mode = #tpu.pipeline_mode<synchronous>, transform_indices = @transform_3, window_bounds = array<i64: 3, 128>}, {transform_indices = @transform_4, window_bounds = array<i64: 16, 3>}]} {
    %c0 = arith.constant 0 : index
    %c0_0 = arith.constant 0 : index
    %0 = vector.load %arg1[%c0, %c0_0] : memref<16x3xf32, #tpu.memory_space<vmem>>, vector<16x3xf32>
    %c0_1 = arith.constant 0 : index
    %c0_2 = arith.constant 0 : index
    %1 = vector.load %arg2[%c0_1, %c0_2] : memref<3x128xf32, #tpu.memory_space<vmem>>, vector<3x128xf32>
    %c0_3 = arith.constant 0 : index
    %c0_4 = arith.constant 0 : index
    %2 = vector.load %arg4[%c0_3, %c0_4] : memref<3x128xf32, #tpu.memory_space<vmem>>, vector<1x128xf32>
    %3 = vector.extract_strided_slice %0 {offsets = [0, 0], sizes = [16, 1], strides = [1, 1]} : vector<16x3xf32> to vector<16x1xf32>
    %4 = vector.extract_strided_slice %1 {offsets = [0, 0], sizes = [1, 128], strides = [1, 1]} : vector<3x128xf32> to vector<1x128xf32>
    %5 = vector.broadcast %3 : vector<16x1xf32> to vector<16x128xf32>
    %6 = vector.broadcast %4 : vector<1x128xf32> to vector<16x128xf32>
    %7 = arith.mulf %5, %6 : vector<16x128xf32>
    %8 = vector.broadcast %2 : vector<1x128xf32> to vector<16x128xf32>
    %9 = arith.addf %8, %7 : vector<16x128xf32>
    %10 = vector.extract_strided_slice %0 {offsets = [0, 1], sizes = [16, 1], strides = [1, 1]} : vector<16x3xf32> to vector<16x1xf32>
    %11 = vector.extract_strided_slice %1 {offsets = [1, 0], sizes = [1, 128], strides = [1, 1]} : vector<3x128xf32> to vector<1x128xf32>
    %12 = vector.broadcast %10 : vector<16x1xf32> to vector<16x128xf32>
    %13 = vector.broadcast %11 : vector<1x128xf32> to vector<16x128xf32>
    %14 = arith.mulf %12, %13 : vector<16x128xf32>
    %15 = arith.addf %9, %14 : vector<16x128xf32>
    %16 = vector.extract_strided_slice %0 {offsets = [0, 2], sizes = [16, 1], strides = [1, 1]} : vector<16x3xf32> to vector<16x1xf32>
    %17 = vector.extract_strided_slice %1 {offsets = [2, 0], sizes = [1, 128], strides = [1, 1]} : vector<3x128xf32> to vector<1x128xf32>
    %18 = vector.broadcast %16 : vector<16x1xf32> to vector<16x128xf32>
    %19 = vector.broadcast %17 : vector<1x128xf32> to vector<16x128xf32>
    %20 = arith.mulf %18, %19 : vector<16x128xf32>
    %21 = arith.addf %15, %20 : vector<16x128xf32>
    %22 = math.tanh %21 : vector<16x128xf32>
    %23 = arith.truncf %22 : vector<16x128xf32> to vector<16x128xbf16>
    %c0_5 = arith.constant 0 : index
    %c0_6 = arith.constant 0 : index
    %c0_7 = arith.constant 0 : index
    %24 = vector.load %arg3[%c0_5, %c0_6, %c0_7] : memref<2x128x128xbf16, #tpu.memory_space<vmem>>, vector<1x128x128xbf16>
    %25 = vector.shape_cast %24 : vector<1x128x128xbf16> to vector<128x128xbf16>
    %cst = arith.constant dense<0.000000e+00> : vector<16x128xf32>
    %26 = tpu.matmul %23, %25, %cst {dimension_numbers = #tpu.dot_dimension_numbers<[1], [0], [0], [1], [0, 0, 1, 1], [], []>} : vector<16x128xbf16>, vector<128x128xbf16>, vector<16x128xf32> -> vector<16x128xf32>
    %c1 = arith.constant 1 : index
    %c0_8 = arith.constant 0 : index
    %27 = vector.load %arg4[%c1, %c0_8] : memref<3x128xf32, #tpu.memory_space<vmem>>, vector<1x128xf32>
    %28 = vector.broadcast %27 : vector<1x128xf32> to vector<16x128xf32>
    %29 = arith.addf %26, %28 : vector<16x128xf32>
    %30 = math.tanh %29 : vector<16x128xf32>
    %31 = arith.truncf %30 : vector<16x128xf32> to vector<16x128xbf16>
    %c1_9 = arith.constant 1 : index
    %c0_10 = arith.constant 0 : index
    %c0_11 = arith.constant 0 : index
    %32 = vector.load %arg3[%c1_9, %c0_10, %c0_11] : memref<2x128x128xbf16, #tpu.memory_space<vmem>>, vector<1x128x128xbf16>
    %33 = vector.shape_cast %32 : vector<1x128x128xbf16> to vector<128x128xbf16>
    %cst_12 = arith.constant dense<0.000000e+00> : vector<16x128xf32>
    %34 = tpu.matmul %31, %33, %cst_12 {dimension_numbers = #tpu.dot_dimension_numbers<[1], [0], [0], [1], [0, 0, 1, 1], [], []>} : vector<16x128xbf16>, vector<128x128xbf16>, vector<16x128xf32> -> vector<16x128xf32>
    %c2 = arith.constant 2 : index
    %c0_13 = arith.constant 0 : index
    %35 = vector.load %arg4[%c2, %c0_13] : memref<3x128xf32, #tpu.memory_space<vmem>>, vector<1x128xf32>
    %36 = vector.broadcast %35 : vector<1x128xf32> to vector<16x128xf32>
    %37 = arith.addf %34, %36 : vector<16x128xf32>
    %38 = math.absf %37 : vector<16x128xf32>
    %39 = vector.extract_strided_slice %38 {offsets = [0, 0], sizes = [16, 3], strides = [1, 1]} : vector<16x128xf32> to vector<16x3xf32>
    %c0_14 = arith.constant 0 : index
    %c0_15 = arith.constant 0 : index
    %40 = vector.load %arg5[%c0_14, %c0_15] : memref<16x3xf32, #tpu.memory_space<vmem>>, vector<16x3xf32>
    tpu.vector_store %arg5[%c0_14, %c0_15], %39 {strides = array<i32>} : memref<16x3xf32, #tpu.memory_space<vmem>>, vector<16x3xf32>,
    return
  }
  func.func @transform_0(%arg0: i32) -> (i32, i32) {
    %c0_i32 = arith.constant 0 : i32
    %c0_i32_0 = arith.constant 0 : i32
    return %arg0, %c0_i32 : i32, i32
  }
  func.func @transform_1(%arg0: i32) -> (i32, i32) {
    %c0_i32 = arith.constant 0 : i32
    %c0_i32_0 = arith.constant 0 : i32
    %c0_i32_1 = arith.constant 0 : i32
    return %c0_i32, %c0_i32_0 : i32, i32
  }
  func.func @transform_2(%arg0: i32) -> (i32, i32, i32) {
    %c0_i32 = arith.constant 0 : i32
    %c0_i32_0 = arith.constant 0 : i32
    %c0_i32_1 = arith.constant 0 : i32
    %c0_i32_2 = arith.constant 0 : i32
    return %c0_i32, %c0_i32_0, %c0_i32_1 : i32, i32, i32
  }
  func.func @transform_3(%arg0: i32) -> (i32, i32) {
    %c0_i32 = arith.constant 0 : i32
    %c0_i32_0 = arith.constant 0 : i32
    %c0_i32_1 = arith.constant 0 : i32
    return %c0_i32, %c0_i32_0 : i32, i32
  }
  func.func @transform_4(%arg0: i32) -> (i32, i32) {
    %c0_i32 = arith.constant 0 : i32
    %c0_i32_0 = arith.constant 0 : i32
    return %arg0, %c0_i32 : i32, i32
  }
}

</mosaic_0001>

<llo_original>
// kernel: tpu_custom_call.1
$region0: #{tpu_custom_call.1}
  #allocation0 [shape = 'u32[]', space=smem, size = 0x4, offset = 0x4, fixed_abs, tag = 'smem constant byte address 0x4 - core index']
  #allocation1 [shape = 'u32[72,128]{1,0:T(1,128)}', space=vmem, size = 0x9000, scoped, tag = 'internal scratch']
  %s0 = inlined_call_operand.vmem [shape: f32[16,3], index: 0, kind: input, shape index: {}]
  %s1 = inlined_call_operand.vmem [shape: f32[3,128], index: 1, kind: input, shape index: {}]
  %s2 = inlined_call_operand.hbm [shape: bf16[2,128,128], index: 2, kind: input, shape index: {}]
  %s3 = inlined_call_operand.vmem [shape: f32[3,128], index: 3, kind: input, shape index: {}]
  %s4 = inlined_call_operand.vmem [shape: f32[16,3], index: 4, kind: output, shape index: {}]
  %s5 = sld [smem:[#allocation0]]
  $region30: #{tpu_custom_call.1} parent=0
    _
  %s7 = ssub.s32 1, %s5
  %s8 = scalar_select 0, %s7, %s5
  $region1: #{tpu_custom_call.1} parent=0
    #allocation2 [shape = 'u8[65536]{0}', space=vmem, size = 0x10000, scoped, tag = 'input window, operand 2, single buffered']
    #allocation3 [shape = 's32[1]{0}', space=sflag, size = 0x4, scoped, tag = 'scoped memory for tpu_custom_call.1']
    %9 = vsyncpa [#allocation3], 0
    // Predicated region
    $region2: #{tpu_custom_call.1} parent=1 // pred_check
      _
    $region3: #{tpu_custom_call.1} parent=1 // pred_check_branch
      %11 = sbr.rel (0) target = $region5
    $region4: #{tpu_custom_call.1} parent=1 // pred_region
      _
    $region5: #{tpu_custom_call.1} parent=1 // pred_fallthru
      _
    // Predicated region
    $region6: #{tpu_custom_call.1} parent=1 // pred_check
      _
    $region7: #{tpu_custom_call.1} parent=1 // pred_check_branch
      %13 = sbr.rel (0) target = $region9
    $region8: #{tpu_custom_call.1} parent=1 // pred_region
      _
    $region9: #{tpu_custom_call.1} parent=1 // pred_fallthru
      _
    // Predicated region
    $region10: #{tpu_custom_call.1} parent=1 // pred_check
      _
    $region11: #{tpu_custom_call.1} parent=1 // pred_check_branch
      %15 = sbr.rel (0) target = $region13
    $region12: #{tpu_custom_call.1} parent=1 // pred_region
      %17 = vsyncadd [#allocation3], 0
      %s18 = sshll.u32 %s2, 4
      %s19 = int_to_ptr.hbm [resolvable:$true] %s18
      %s20 = sshll.u32 [#allocation2], 4
      %s21 = int_to_ptr.vmem [resolvable:$true] %s20
      %26 = dma.hbm_to_vmem [thread:$0]  %s19, 2048, %s21, [#allocation3], 64, 64, 4
    $region13: #{tpu_custom_call.1} parent=1 // pred_fallthru
      _
    // Predicated region
    $region14: #{tpu_custom_call.1} parent=1 // pred_check
      _
    $region15: #{tpu_custom_call.1} parent=1 // pred_check_branch
      %28 = sbr.rel (0) target = $region17
    $region16: #{tpu_custom_call.1} parent=1 // pred_region
      _
    $region17: #{tpu_custom_call.1} parent=1 // pred_fallthru
      _
    // Predicated region
    $region18: #{tpu_custom_call.1} parent=1 // pred_check
      _
    $region19: #{tpu_custom_call.1} parent=1 // pred_check_branch
      %30 = sbr.rel (0) target = $region21
    $region20: #{tpu_custom_call.1} parent=1 // pred_region
      %32 = dma.done [#allocation3], 2048
    $region21: #{tpu_custom_call.1} parent=1 // pred_fallthru
      _
    %v33 = vld [vmem:[%s0] sm:$0xff]
    %v34 = vld [vmem:[%s0 + $0x8] sm:$0xff]
    %v35 = vld [vmem:[%s1] sm:$0x7]
    %v36 = vld [vmem:[%s3] sm:$0x1]
    %38 = vset.pattern.permute.xlu0 0
    %39 = vperm.xlu0 %38, %v33
    %v40 = vpop.permute.xlu0 %39
    %43 = vset.pattern.permute.xlu0 0
    %44 = vperm.xlu0 %43, %v34
    %v45 = vpop.permute.xlu0 %44
    %v47 = vperm.slane %v35, 0
    %v48 = vmul.f32 %v40, %v47
    %v49 = vmul.f32 %v45, %v47
    %v50 = vperm.slane %v36, 0
    %v51 = vadd.f32 %v50, %v48
    %v52 = vadd.f32 %v50, %v49
    %53 = vset.pattern.permute.xlu0 1
    %54 = vperm.xlu0 %53, %v33
    %v55 = vpop.permute.xlu0 %54
    %57 = vset.pattern.permute.xlu0 1
    %58 = vperm.xlu0 %57, %v34
    %v59 = vpop.permute.xlu0 %58
    %v61 = vperm.slane %v35, 1
    %v62 = vmul.f32 %v55, %v61
    %v63 = vmul.f32 %v59, %v61
    %v64 = vadd.f32 %v51, %v62
    %v65 = vadd.f32 %v52, %v63
    %66 = vset.pattern.permute.xlu0 2
    %67 = vperm.xlu0 %66, %v33
    %v68 = vpop.permute.xlu0 %67
    %70 = vset.pattern.permute.xlu0 2
    %71 = vperm.xlu0 %70, %v34
    %v72 = vpop.permute.xlu0 %71
    %v74 = vperm.slane %v35, 2
    %v75 = vmul.f32 %v68, %v74
    %v76 = vmul.f32 %v72, %v74
    %v77 = vadd.f32 %v64, %v75
    %v78 = vadd.f32 %v65, %v76
    %v79 = vtanh.pop %v77
    %v80 = vtanh.pop %v78
    %v81 = vpack.c.bf16 %v80, %v79
    %v82 = vld [vmem:[#allocation2] sm:$0xf]
    %v83 = vld [vmem:[#allocation2 + $0x4] sm:$0xf]
    %v84 = vld [vmem:[#allocation2 + $0x8] sm:$0xf]
    %v85 = vld [vmem:[#allocation2 + $0xc] sm:$0xf]
    %v86 = vld [vmem:[#allocation2 + $0x10] sm:$0xf]
    %v87 = vld [vmem:[#allocation2 + $0x14] sm:$0xf]
    %v88 = vld [vmem:[#allocation2 + $0x18] sm:$0xf]
    %v89 = vld [vmem:[#allocation2 + $0x1c] sm:$0xf]
    %v90 = vld [vmem:[#allocation2 + $0x20] sm:$0xf]
    %v91 = vld [vmem:[#allocation2 + $0x24] sm:$0xf]
    %v92 = vld [vmem:[#allocation2 + $0x28] sm:$0xf]
    %v93 = vld [vmem:[#allocation2 + $0x2c] sm:$0xf]
    %v94 = vld [vmem:[#allocation2 + $0x30] sm:$0xf]
    %v95 = vld [vmem:[#allocation2 + $0x34] sm:$0xf]
    %v96 = vld [vmem:[#allocation2 + $0x38] sm:$0xf]
    %v97 = vld [vmem:[#allocation2 + $0x3c] sm:$0xf]
    %v98 = vld [vmem:[%s3 + $0x1] sm:$0x1]
    %v99 = vperm.slane %v98, 0
    %v116 = vunpack.c.l.b16 %v82
    %v117 = vunpack.c.l.b16 %v83
    %v118 = vunpack.c.l.b16 %v84
    %v119 = vunpack.c.l.b16 %v85
    %v120 = vunpack.c.l.b16 %v86
    %v121 = vunpack.c.l.b16 %v87
    %v122 = vunpack.c.l.b16 %v88
    %v123 = vunpack.c.l.b16 %v89
    %v124 = vunpack.c.l.b16 %v90
    %v125 = vunpack.c.l.b16 %v91
    %v126 = vunpack.c.l.b16 %v92
    %v127 = vunpack.c.l.b16 %v93
    %v128 = vunpack.c.l.b16 %v94
    %v129 = vunpack.c.l.b16 %v95
    %v130 = vunpack.c.l.b16 %v96
    %v131 = vunpack.c.l.b16 %v97
    %v132 = vpack.c.b16 %v117, %v116
    %v133 = vpack.c.b16 %v119, %v118
    %v134 = vpack.c.b16 %v121, %v120
    %v135 = vpack.c.b16 %v123, %v122
    %v136 = vpack.c.b16 %v125, %v124
    %v137 = vpack.c.b16 %v127, %v126
    %v138 = vpack.c.b16 %v129, %v128
    %v139 = vpack.c.b16 %v131, %v130
    %148 = vmatpush.bf16.msra.mxu0 %v139
    %149 = vmatpush.bf16.msra.mxu0 %v138
    %150 = vmatpush.bf16.msra.mxu0 %v137
    %151 = vmatpush.bf16.msra.mxu0 %v136
    %152 = vmatpush.bf16.msra.mxu0 %v135
    %153 = vmatpush.bf16.msra.mxu0 %v134
    %154 = vmatpush.bf16.msra.mxu0 %v133
    %155 = vmatpush.bf16.msra.mxu0 %v132
    %156 = vmatmul.bf16.gmra.mxu0 %v81
    %v157 = vpop.f32.mrf.mxu0
    %v158 = vadd.f32 %v99, %v157
    %v159 = vpop.f32.mrf.mxu0
    %v160 = vadd.f32 %v99, %v159
    %161 = vdwg.mxu0
    %v162 = vtanh.pop %v158
    %v163 = vtanh.pop %v160
    %v164 = vpack.c.bf16 %v163, %v162
    %s165 = scalar_lea.vmem [#allocation2], 64
    %v166 = vld [vmem:[%s165] sm:$0xf]
    %v167 = vld [vmem:[%s165 + $0x4] sm:$0xf]
    %v168 = vld [vmem:[%s165 + $0x8] sm:$0xf]
    %v169 = vld [vmem:[%s165 + $0xc] sm:$0xf]
    %v170 = vld [vmem:[%s165 + $0x10] sm:$0xf]
    %v171 = vld [vmem:[%s165 + $0x14] sm:$0xf]
    %v172 = vld [vmem:[%s165 + $0x18] sm:$0xf]
    %v173 = vld [vmem:[%s165 + $0x1c] sm:$0xf]
    %v174 = vld [vmem:[%s165 + $0x20] sm:$0xf]
    %v175 = vld [vmem:[%s165 + $0x24] sm:$0xf]
    %v176 = vld [vmem:[%s165 + $0x28] sm:$0xf]
    %v177 = vld [vmem:[%s165 + $0x2c] sm:$0xf]
    %v178 = vld [vmem:[%s165 + $0x30] sm:$0xf]
    %v179 = vld [vmem:[%s165 + $0x34] sm:$0xf]
    %v180 = vld [vmem:[%s165 + $0x38] sm:$0xf]
    %v181 = vld [vmem:[%s165 + $0x3c] sm:$0xf]
    %v182 = vld [vmem:[%s3 + $0x2] sm:$0x1]
    %v183 = vperm.slane %v182, 0
    %v200 = vunpack.c.l.b16 %v166
    %v201 = vunpack.c.l.b16 %v167
    %v202 = vunpack.c.l.b16 %v168
    %v203 = vunpack.c.l.b16 %v169
    %v204 = vunpack.c.l.b16 %v170
    %v205 = vunpack.c.l.b16 %v171
    %v206 = vunpack.c.l.b16 %v172
    %v207 = vunpack.c.l.b16 %v173
    %v208 = vunpack.c.l.b16 %v174
    %v209 = vunpack.c.l.b16 %v175
    %v210 = vunpack.c.l.b16 %v176
    %v211 = vunpack.c.l.b16 %v177
    %v212 = vunpack.c.l.b16 %v178
    %v213 = vunpack.c.l.b16 %v179
    %v214 = vunpack.c.l.b16 %v180
    %v215 = vunpack.c.l.b16 %v181
    %v216 = vpack.c.b16 %v201, %v200
    %v217 = vpack.c.b16 %v203, %v202
    %v218 = vpack.c.b16 %v205, %v204
    %v219 = vpack.c.b16 %v207, %v206
    %v220 = vpack.c.b16 %v209, %v208
    %v221 = vpack.c.b16 %v211, %v210
    %v222 = vpack.c.b16 %v213, %v212
    %v223 = vpack.c.b16 %v215, %v214
    %232 = vmatpush.bf16.msra.mxu0 %v223
    %233 = vmatpush.bf16.msra.mxu0 %v222
    %234 = vmatpush.bf16.msra.mxu0 %v221
    %235 = vmatpush.bf16.msra.mxu0 %v220
    %236 = vmatpush.bf16.msra.mxu0 %v219
    %237 = vmatpush.bf16.msra.mxu0 %v218
    %238 = vmatpush.bf16.msra.mxu0 %v217
    %239 = vmatpush.bf16.msra.mxu0 %v216
    %240 = vmatmul.bf16.gmra.mxu0 %v164
    %v241 = vpop.f32.mrf.mxu0
    %v242 = vadd.f32 %v183, %v241
    %v243 = vpop.f32.mrf.mxu0
    %v244 = vadd.f32 %v183, %v243
    %245 = vdwg.mxu0
    %v246 = vand.u32 2147483647, %v242
    %v247 = vand.u32 2147483647, %v244
    %vm248 = vcmask 23552
    %249 = vst.msk [vmem:[%s4] sm:$0xff] %vm248, %v246
    %250 = vst.msk [vmem:[%s4 + $0x8] sm:$0xff] %vm248, %v247
    // Predicated region
    $region22: #{tpu_custom_call.1} parent=1 // pred_check
      _
    $region23: #{tpu_custom_call.1} parent=1 // pred_check_branch
      %252 = sbr.rel (0) target = $region25
    $region24: #{tpu_custom_call.1} parent=1 // pred_region
      _
    $region25: #{tpu_custom_call.1} parent=1 // pred_fallthru
      _
    // Predicated region
    $region26: #{tpu_custom_call.1} parent=1 // pred_check
      _
    $region27: #{tpu_custom_call.1} parent=1 // pred_check_branch
      %254 = sbr.rel (0) target = $region29
    $region28: #{tpu_custom_call.1} parent=1 // pred_region
      _
    $region29: #{tpu_custom_call.1} parent=1 // pred_fallthru
      _
    %255 = vsyncpa [#allocation3], 1

</llo_original>
